<compile_context>
chip_gen: v6e
topology: v6e:2x2x1
jax: 0.10.0
libtpu: 0.0.40
codegen_flags: <defaults>
</compile_context>

<pallas_src>
from functools import partial

import jax
import jax.numpy as jnp
from jax.experimental import pallas as pl
from jax.experimental.pallas import tpu as pltpu

LANE = 128  # one lane-tile; all layer widths here are <= 128


def _mlp_kernel(d_in, d_out, x_ref, w_ref, b_ref, o_ref):
    """x_ref: [B, d_in]; w_ref: [3, 128, 128] zero-padded W^T slab;
    b_ref: [3, 128] zero-padded bias slab; o_ref: [B, d_out]."""
    # fc1 + relu (slice W1^T's rows to the true input width; 32 is 8-aligned).
    w1 = w_ref[0][:d_in, :]                                   # [d_in, 128]
    h = jnp.dot(x_ref[...], w1, preferred_element_type=jnp.float32)
    h = jnp.maximum(h + b_ref[0:1, :], 0.0)                   # padded lanes stay 0
    # fc2 + relu (padded rows/cols of the slab are zero -> no effect).
    h = jnp.dot(h, w_ref[1], preferred_element_type=jnp.float32)
    h = jnp.maximum(h + b_ref[1:2, :], 0.0)
    # fc3 (no activation); store only the true output lanes (small masked vst).
    h = jnp.dot(h, w_ref[2], preferred_element_type=jnp.float32)
    h = h + b_ref[2:3, :]
    o_ref[...] = h[:, :d_out].astype(o_ref.dtype)


def prepare_params(params):
    """One-time param prep (outside the hot path): transpose weights to
    [in, out] and pack everything into two zero-padded slabs so the kernel
    needs only 3 input DMAs total."""
    wslab = jnp.zeros((3, LANE, LANE), jnp.float32)
    bslab = jnp.zeros((3, LANE), jnp.float32)
    dims = []
    for i in range(3):
        wt = jnp.asarray(params[f"w{i + 1}"], jnp.float32).T  # [din, dout]
        b = jnp.asarray(params[f"b{i + 1}"], jnp.float32)
        din, dout = wt.shape
        assert din <= LANE and dout <= LANE, "pack assumes layer widths <= 128"
        wslab = wslab.at[i, :din, :dout].set(wt)
        bslab = bslab.at[i, :dout].set(b)
        dims.append((din, dout))
    return {
        "wslab": wslab,
        "bslab": bslab,
        "d_in": dims[0][0],
        "d_out": dims[-1][1],
    }


@partial(jax.jit, static_argnames=("d_in", "d_out"))
def mlp_forward(x, wslab, bslab, *, d_in, d_out):
    """x: [B, d_in] float32. Single-block kernel, no grid (everything fits
    trivially in VMEM on v5e/v6e/v7x at these sizes)."""
    B = x.shape[0]
    vmem = pl.BlockSpec(memory_space=pltpu.MemorySpace.VMEM)
    # Rough cost of what actually runs (padded MXU tiles), in f32 bytes.
    flops = 2 * B * (d_in * LANE + LANE * LANE + LANE * LANE)
    bytes_accessed = 4 * (x.size + wslab.size + bslab.size + B * d_out)
    return pl.pallas_call(
        partial(_mlp_kernel, d_in, d_out),
        out_shape=jax.ShapeDtypeStruct((B, d_out), x.dtype),
        in_specs=[vmem, vmem, vmem],
        out_specs=vmem,
        cost_estimate=pl.CostEstimate(
            flops=flops, transcendentals=0, bytes_accessed=bytes_accessed),
    )(x, wslab, bslab)


def init_params(key, layer_numbers):
    """Deterministic init mimicking nn.Linear's U(-1/sqrt(fan_in), 1/sqrt(fan_in)).
    Weights stored PyTorch-convention [out, in], biases [out]."""
    params = {}
    ks = jax.random.split(key, 6)
    dims = list(zip(layer_numbers[:-1], layer_numbers[1:]))  # (in, out) per layer
    for li, (din, dout) in enumerate(dims, start=1):
        bound = 1.0 / jnp.sqrt(jnp.float32(din))
        params[f"w{li}"] = jax.random.uniform(
            ks[2 * (li - 1)], (dout, din), jnp.float32, -bound, bound)
        params[f"b{li}"] = jax.random.uniform(
            ks[2 * (li - 1) + 1], (dout,), jnp.float32, -bound, bound)
    return params


def _reference(x, params):
    h = jnp.maximum(x @ params["w1"].T + params["b1"], 0.0)
    h = jnp.maximum(h @ params["w2"].T + params["b2"], 0.0)
    return h @ params["w3"].T + params["b3"]


if __name__ == "__main__":
    layer_numbers = [32, 64, 48, 16]
    B = 64

    key = jax.random.PRNGKey(0)
    kx, kp = jax.random.split(key)
    x = jax.random.normal(kx, (B, layer_numbers[0]), jnp.float32)
    params = init_params(kp, layer_numbers)

    prep = prepare_params(params)          # one-time, outside the hot path
    out = mlp_forward(x, prep["wslab"], prep["bslab"],
                      d_in=prep["d_in"], d_out=prep["d_out"])
    out = jax.block_until_ready(out)

    ref = _reference(x, params)
    assert out.shape == (B, layer_numbers[-1])
    assert jnp.allclose(out, ref, atol=1e-5, rtol=1e-5)

    print("KERNEL_OK")
</pallas_src>

<mosaic_0001>
module attributes {stable_mosaic.version = 11 : i64} {
  func.func @_mlp_kernel(%arg0: memref<64x32xf32, #tpu.memory_space<vmem>>, %arg1: memref<3x128x128xf32, #tpu.memory_space<vmem>>, %arg2: memref<3x128xf32, #tpu.memory_space<vmem>>, %arg3: memref<64x16xf32, #tpu.memory_space<vmem>>) attributes {dimension_semantics = [], scalar_prefetch = 0 : i64, scratch_operands = 0 : i64, tpu.core_type = #tpu.core_type<tc>} {
    %c0 = arith.constant 0 : index
    %c0_0 = arith.constant 0 : index
    %c0_1 = arith.constant 0 : index
    %0 = vector.load %arg1[%c0, %c0_0, %c0_1] : memref<3x128x128xf32, #tpu.memory_space<vmem>>, vector<1x128x128xf32>
    %1 = vector.shape_cast %0 : vector<1x128x128xf32> to vector<128x128xf32>
    %2 = vector.extract_strided_slice %1 {offsets = [0, 0], sizes = [32, 128], strides = [1, 1]} : vector<128x128xf32> to vector<32x128xf32>
    %c0_2 = arith.constant 0 : index
    %c0_3 = arith.constant 0 : index
    %3 = vector.load %arg0[%c0_2, %c0_3] : memref<64x32xf32, #tpu.memory_space<vmem>>, vector<64x32xf32>
    %cst = arith.constant dense<0.000000e+00> : vector<64x128xf32>
    %4 = tpu.matmul %3, %2, %cst {dimension_numbers = #tpu.dot_dimension_numbers<[1], [0], [0], [1], [0, 0, 1, 1], [], []>} : vector<64x32xf32>, vector<32x128xf32>, vector<64x128xf32> -> vector<64x128xf32>
    %c0_4 = arith.constant 0 : index
    %c0_5 = arith.constant 0 : index
    %5 = vector.load %arg2[%c0_4, %c0_5] : memref<3x128xf32, #tpu.memory_space<vmem>>, vector<1x128xf32>
    %6 = vector.broadcast %5 : vector<1x128xf32> to vector<64x128xf32>
    %7 = arith.addf %4, %6 : vector<64x128xf32>
    %cst_6 = arith.constant 0.000000e+00 : f32
    %8 = vector.broadcast %cst_6 : f32 to vector<64x128xf32>
    %9 = arith.maximumf %7, %8 : vector<64x128xf32>
    %c1 = arith.constant 1 : index
    %c0_7 = arith.constant 0 : index
    %c0_8 = arith.constant 0 : index
    %10 = vector.load %arg1[%c1, %c0_7, %c0_8] : memref<3x128x128xf32, #tpu.memory_space<vmem>>, vector<1x128x128xf32>
    %11 = vector.shape_cast %10 : vector<1x128x128xf32> to vector<128x128xf32>
    %cst_9 = arith.constant dense<0.000000e+00> : vector<64x128xf32>
    %12 = tpu.matmul %9, %11, %cst_9 {dimension_numbers = #tpu.dot_dimension_numbers<[1], [0], [0], [1], [0, 0, 1, 1], [], []>} : vector<64x128xf32>, vector<128x128xf32>, vector<64x128xf32> -> vector<64x128xf32>
    %c1_10 = arith.constant 1 : index
    %c0_11 = arith.constant 0 : index
    %13 = vector.load %arg2[%c1_10, %c0_11] : memref<3x128xf32, #tpu.memory_space<vmem>>, vector<1x128xf32>
    %14 = vector.broadcast %13 : vector<1x128xf32> to vector<64x128xf32>
    %15 = arith.addf %12, %14 : vector<64x128xf32>
    %cst_12 = arith.constant 0.000000e+00 : f32
    %16 = vector.broadcast %cst_12 : f32 to vector<64x128xf32>
    %17 = arith.maximumf %15, %16 : vector<64x128xf32>
    %c2 = arith.constant 2 : index
    %c0_13 = arith.constant 0 : index
    %c0_14 = arith.constant 0 : index
    %18 = vector.load %arg1[%c2, %c0_13, %c0_14] : memref<3x128x128xf32, #tpu.memory_space<vmem>>, vector<1x128x128xf32>
    %19 = vector.shape_cast %18 : vector<1x128x128xf32> to vector<128x128xf32>
    %cst_15 = arith.constant dense<0.000000e+00> : vector<64x128xf32>
    %20 = tpu.matmul %17, %19, %cst_15 {dimension_numbers = #tpu.dot_dimension_numbers<[1], [0], [0], [1], [0, 0, 1, 1], [], []>} : vector<64x128xf32>, vector<128x128xf32>, vector<64x128xf32> -> vector<64x128xf32>
    %c2_16 = arith.constant 2 : index
    %c0_17 = arith.constant 0 : index
    %21 = vector.load %arg2[%c2_16, %c0_17] : memref<3x128xf32, #tpu.memory_space<vmem>>, vector<1x128xf32>
    %22 = vector.broadcast %21 : vector<1x128xf32> to vector<64x128xf32>
    %23 = arith.addf %20, %22 : vector<64x128xf32>
    %24 = vector.extract_strided_slice %23 {offsets = [0, 0], sizes = [64, 16], strides = [1, 1]} : vector<64x128xf32> to vector<64x16xf32>
    %c0_18 = arith.constant 0 : index
    %c0_19 = arith.constant 0 : index
    %25 = vector.load %arg3[%c0_18, %c0_19] : memref<64x16xf32, #tpu.memory_space<vmem>>, vector<64x16xf32>
    tpu.vector_store %arg3[%c0_18, %c0_19], %24 {strides = array<i32>} : memref<64x16xf32, #tpu.memory_space<vmem>>, vector<64x16xf32>,
    return
  }
}

</mosaic_0001>

<llo_original>
// kernel: mlp_forward.1
$region0: #{mlp_forward.1}
  #allocation0 [shape = 'u32[]', space=smem, size = 0x4, offset = 0x4, fixed_abs, tag = 'smem constant byte address 0x4 - core index']
  #allocation1 [shape = 'u32[144,128]{1,0:T(1,128)}', space=vmem, size = 0x12000, scoped, tag = 'internal scratch']
  %s0 = inlined_call_operand.vmem [shape: f32[64,32], index: 0, kind: input, shape index: {}]
  %s1 = inlined_call_operand.hbm [shape: f32[3,128,128], index: 1, kind: input, shape index: {}]
  %s2 = inlined_call_operand.vmem [shape: f32[3,128], index: 2, kind: input, shape index: {}]
  %s3 = inlined_call_operand.vmem [shape: f32[64,16], index: 3, kind: output, shape index: {}]
  %s4 = sld [smem:[#allocation0]]
  $region26: #{mlp_forward.1} parent=0
    _
  %s6 = ssub.s32 1, %s4
  %s7 = scalar_select 0, %s6, %s4
  $region1: #{mlp_forward.1} parent=0
    #allocation2 [shape = 'u8[196608]{0}', space=vmem, size = 0x30000, scoped, tag = 'input window, operand 1, single buffered']
    #allocation3 [shape = 's32[1]{0}', space=sflag, size = 0x4, scoped, tag = 'scoped memory for mlp_forward.1']
    %8 = vsyncpa [#allocation3], 0
    // Predicated region
    $region2: #{mlp_forward.1} parent=1 // pred_check
      _
    $region3: #{mlp_forward.1} parent=1 // pred_check_branch
      %10 = sbr.rel (0) target = $region5
    $region4: #{mlp_forward.1} parent=1 // pred_region
      _
    $region5: #{mlp_forward.1} parent=1 // pred_fallthru
      _
    // Predicated region
    $region6: #{mlp_forward.1} parent=1 // pred_check
      _
    $region7: #{mlp_forward.1} parent=1 // pred_check_branch
      %12 = sbr.rel (0) target = $region9
    $region8: #{mlp_forward.1} parent=1 // pred_region
      %s14 = ssub.s32 6144, 6144
      %15 = vsyncadd [#allocation3], %s14
      %s16 = sshll.u32 [#allocation2], 4
      %s17 = int_to_ptr.vmem [resolvable:$true] %s16
      %22 = dma.hbm_to_vmem [thread:$0]  %s1, 6144, %s17, [#allocation3], 128, 128, 8
    $region9: #{mlp_forward.1} parent=1 // pred_fallthru
      _
    // Predicated region
    $region10: #{mlp_forward.1} parent=1 // pred_check
      _
    $region11: #{mlp_forward.1} parent=1 // pred_check_branch
      %24 = sbr.rel (0) target = $region13
    $region12: #{mlp_forward.1} parent=1 // pred_region
      _
    $region13: #{mlp_forward.1} parent=1 // pred_fallthru
      _
    // Predicated region
    $region14: #{mlp_forward.1} parent=1 // pred_check
      _
    $region15: #{mlp_forward.1} parent=1 // pred_check_branch
      %26 = sbr.rel (0) target = $region17
    $region16: #{mlp_forward.1} parent=1 // pred_region
      %27 = dma.done [#allocation3], 6144
    $region17: #{mlp_forward.1} parent=1 // pred_fallthru
      _
    %v28 = vld [vmem:[#allocation2] sm:$0xff]
    %v29 = vld [vmem:[#allocation2 + $0x8] sm:$0xff]
    %v30 = vld [vmem:[#allocation2 + $0x10] sm:$0xff]
    %v31 = vld [vmem:[#allocation2 + $0x18] sm:$0xff]
    %v32 = vld [vmem:[%s0] sm:$0xff]
    %v33 = vld [vmem:[%s0 + $0x8] sm:$0xff]
    %v34 = vld [vmem:[%s0 + $0x10] sm:$0xff]
    %v35 = vld [vmem:[%s0 + $0x18] sm:$0xff]
    %v36 = vld [vmem:[%s0 + $0x20] sm:$0xff]
    %v37 = vld [vmem:[%s0 + $0x28] sm:$0xff]
    %v38 = vld [vmem:[%s0 + $0x30] sm:$0xff]
    %v39 = vld [vmem:[%s0 + $0x38] sm:$0xff]
    %v40 = vld [vmem:[%s2] sm:$0x1]
    %v41 = vlaneseq
    %v42 = vshrl.u32 %v41, 7
    %v43 = vsub.s32 0, %v42
    %v44 = vrot.slane %v40, %v43
    %vm45 = vcmask 261120
    %v47 = vsel %vm45, %v32, 0
    %v50 = vsel %vm45, %v33, 0
    %v53 = vsel %vm45, %v34, 0
    %v56 = vsel %vm45, %v35, 0
    %v59 = vsel %vm45, %v36, 0
    %v62 = vsel %vm45, %v37, 0
    %v65 = vsel %vm45, %v38, 0
    %v68 = vsel %vm45, %v39, 0
    %70 = vmatprep.subr.mxu0 0.0
    %71 = vmatpush1.msra.mxu0 0.0
    %72 = vmatprep.subr.mxu0 0.0
    %73 = vmatpush1.msra.mxu0 0.0
    %74 = vmatprep.subr.mxu0 0.0
    %75 = vmatpush1.msra.mxu0 0.0
    %76 = vmatprep.subr.mxu0 0.0
    %77 = vmatpush1.msra.mxu0 0.0
    %78 = vmatprep.subr.mxu0 0.0
    %79 = vmatpush1.msra.mxu0 0.0
    %80 = vmatprep.subr.mxu0 0.0
    %81 = vmatpush1.msra.mxu0 0.0
    %82 = vmatprep.subr.mxu0 0.0
    %83 = vmatpush1.msra.mxu0 0.0
    %84 = vmatprep.subr.mxu0 0.0
    %85 = vmatpush1.msra.mxu0 0.0
    %86 = vmatprep.subr.mxu0 0.0
    %87 = vmatpush1.msra.mxu0 0.0
    %88 = vmatprep.subr.mxu0 0.0
    %89 = vmatpush1.msra.mxu0 0.0
    %90 = vmatprep.subr.mxu0 0.0
    %91 = vmatpush1.msra.mxu0 0.0
    %92 = vmatprep.subr.mxu0 0.0
    %93 = vmatpush1.msra.mxu0 0.0
    %94 = vmatprep.subr.mxu0 0.0
    %95 = vmatpush1.msra.mxu0 %v31
    %96 = vmatprep.subr.mxu0 0.0
    %97 = vmatpush1.msra.mxu0 %v30
    %98 = vmatprep.subr.mxu0 0.0
    %99 = vmatpush1.msra.mxu0 %v29
    %100 = vmatprep.subr.mxu0 0.0
    %101 = vmatpush1.msra.mxu0 %v28
    %102 = vmatprep.subr.mxu0 0.0
    %103 = vmatpush2.msra.mxu0 0.0
    %104 = vmatprep.subr.mxu0 0.0
    %105 = vmatpush2.msra.mxu0 0.0
    %106 = vmatprep.subr.mxu0 0.0
    %107 = vmatpush2.msra.mxu0 0.0
    %108 = vmatprep.subr.mxu0 0.0
    %109 = vmatpush2.msra.mxu0 0.0
    %110 = vmatprep.subr.mxu0 0.0
    %111 = vmatpush2.msra.mxu0 0.0
    %112 = vmatprep.subr.mxu0 0.0
    %113 = vmatpush2.msra.mxu0 0.0
    %114 = vmatprep.subr.mxu0 0.0
    %115 = vmatpush2.msra.mxu0 0.0
    %116 = vmatprep.subr.mxu0 0.0
    %117 = vmatpush2.msra.mxu0 0.0
    %118 = vmatprep.subr.mxu0 0.0
    %119 = vmatpush2.msra.mxu0 0.0
    %120 = vmatprep.subr.mxu0 0.0
    %121 = vmatpush2.msra.mxu0 0.0
    %122 = vmatprep.subr.mxu0 0.0
    %123 = vmatpush2.msra.mxu0 0.0
    %124 = vmatprep.subr.mxu0 0.0
    %125 = vmatpush2.msra.mxu0 0.0
    %126 = vmatprep.subr.mxu0 0.0
    %127 = vmatpush2.msra.mxu0 0.0
    %128 = vmatprep.subr.mxu0 0.0
    %129 = vmatpush2.msra.mxu0 0.0
    %130 = vmatprep.subr.mxu0 0.0
    %131 = vmatpush2.msra.mxu0 0.0
    %132 = vmatprep.subr.mxu0 0.0
    %133 = vmatpush2.msra.mxu0 0.0
    %134 = vmatprep.mubr.f32.mxu0 0.0
    %135 = vmatmul.mubr.f32.gmra.mxu0 %v47
    %v136 = vpop.f32.mrf.mxu0
    %v137 = vadd.f32 %v44, %v136
    %v138 = vpop.f32.mrf.mxu0
    %139 = vmatprep.mubr.f32.mxu0 0.0
    %140 = vmatmul.mubr.f32.gmra.mxu0 %v50
    %v141 = vpop.f32.mrf.mxu0
    %v142 = vadd.f32 %v44, %v141
    %v143 = vpop.f32.mrf.mxu0
    %144 = vmatprep.mubr.f32.mxu0 0.0
    %145 = vmatmul.mubr.f32.gmra.mxu0 %v53
    %v146 = vpop.f32.mrf.mxu0
    %v147 = vadd.f32 %v44, %v146
    %v148 = vpop.f32.mrf.mxu0
    %149 = vmatprep.mubr.f32.mxu0 0.0
    %150 = vmatmul.mubr.f32.gmra.mxu0 %v56
    %v151 = vpop.f32.mrf.mxu0
    %v152 = vadd.f32 %v44, %v151
    %v153 = vpop.f32.mrf.mxu0
    %154 = vmatprep.mubr.f32.mxu0 0.0
    %155 = vmatmul.mubr.f32.gmra.mxu0 %v59
    %v156 = vpop.f32.mrf.mxu0
    %v157 = vadd.f32 %v44, %v156
    %v158 = vpop.f32.mrf.mxu0
    %159 = vmatprep.mubr.f32.mxu0 0.0
    %160 = vmatmul.mubr.f32.gmra.mxu0 %v62
    %v161 = vpop.f32.mrf.mxu0
    %v162 = vadd.f32 %v44, %v161
    %v163 = vpop.f32.mrf.mxu0
    %164 = vmatprep.mubr.f32.mxu0 0.0
    %165 = vmatmul.mubr.f32.gmra.mxu0 %v65
    %v166 = vpop.f32.mrf.mxu0
    %v167 = vadd.f32 %v44, %v166
    %v168 = vpop.f32.mrf.mxu0
    %169 = vmatprep.mubr.f32.mxu0 0.0
    %170 = vmatmul.mubr.f32.gmra.mxu0 %v68
    %v171 = vpop.f32.mrf.mxu0
    %v172 = vadd.f32 %v44, %v171
    %v173 = vpop.f32.mrf.mxu0
    %174 = vdwg.mxu0
    %v175 = vmax.f32 %v137, 0.0
    %v176 = vmax.f32 %v142, 0.0
    %v177 = vmax.f32 %v147, 0.0
    %v178 = vmax.f32 %v152, 0.0
    %v179 = vmax.f32 %v157, 0.0
    %v180 = vmax.f32 %v162, 0.0
    %v181 = vmax.f32 %v167, 0.0
    %v182 = vmax.f32 %v172, 0.0
    %s183 = scalar_lea.vmem [#allocation2], 128
    %v184 = vld [vmem:[%s183] sm:$0xff]
    %v185 = vld [vmem:[%s183 + $0x8] sm:$0xff]
    %v186 = vld [vmem:[%s183 + $0x10] sm:$0xff]
    %v187 = vld [vmem:[%s183 + $0x18] sm:$0xff]
    %v188 = vld [vmem:[%s183 + $0x20] sm:$0xff]
    %v189 = vld [vmem:[%s183 + $0x28] sm:$0xff]
    %v190 = vld [vmem:[%s183 + $0x30] sm:$0xff]
    %v191 = vld [vmem:[%s183 + $0x38] sm:$0xff]
    %v192 = vld [vmem:[%s183 + $0x40] sm:$0xff]
    %v193 = vld [vmem:[%s183 + $0x48] sm:$0xff]
    %v194 = vld [vmem:[%s183 + $0x50] sm:$0xff]
    %v195 = vld [vmem:[%s183 + $0x58] sm:$0xff]
    %v196 = vld [vmem:[%s183 + $0x60] sm:$0xff]
    %v197 = vld [vmem:[%s183 + $0x68] sm:$0xff]
    %v198 = vld [vmem:[%s183 + $0x70] sm:$0xff]
    %v199 = vld [vmem:[%s183 + $0x78] sm:$0xff]
    %v200 = vld [vmem:[%s2 + $0x1] sm:$0x1]
    %v201 = vlaneseq
    %v202 = vshrl.u32 %v201, 7
    %v203 = vsub.s32 0, %v202
    %v204 = vrot.slane %v200, %v203
    %205 = vmatprep.subr.mxu0 0.0
    %206 = vmatpush1.msra.mxu0 %v199
    %207 = vmatprep.subr.mxu0 0.0
    %208 = vmatpush1.msra.mxu0 %v198
    %209 = vmatprep.subr.mxu0 0.0
    %210 = vmatpush1.msra.mxu0 %v197
    %211 = vmatprep.subr.mxu0 0.0
    %212 = vmatpush1.msra.mxu0 %v196
    %213 = vmatprep.subr.mxu0 0.0
    %214 = vmatpush1.msra.mxu0 %v195
    %215 = vmatprep.subr.mxu0 0.0
    %216 = vmatpush1.msra.mxu0 %v194
    %217 = vmatprep.subr.mxu0 0.0
    %218 = vmatpush1.msra.mxu0 %v193
    %219 = vmatprep.subr.mxu0 0.0
    %220 = vmatpush1.msra.mxu0 %v192
    %221 = vmatprep.subr.mxu0 0.0
    %222 = vmatpush1.msra.mxu0 %v191
    %223 = vmatprep.subr.mxu0 0.0
    %224 = vmatpush1.msra.mxu0 %v190
    %225 = vmatprep.subr.mxu0 0.0
    %226 = vmatpush1.msra.mxu0 %v189
    %227 = vmatprep.subr.mxu0 0.0
    %228 = vmatpush1.msra.mxu0 %v188
    %229 = vmatprep.subr.mxu0 0.0
    %230 = vmatpush1.msra.mxu0 %v187
    %231 = vmatprep.subr.mxu0 0.0
    %232 = vmatpush1.msra.mxu0 %v186
    %233 = vmatprep.subr.mxu0 0.0
    %234 = vmatpush1.msra.mxu0 %v185
    %235 = vmatprep.subr.mxu0 0.0
    %236 = vmatpush1.msra.mxu0 %v184
    %237 = vmatprep.subr.mxu0 0.0
    %238 = vmatpush2.msra.mxu0 0.0
    %239 = vmatprep.subr.mxu0 0.0
    %240 = vmatpush2.msra.mxu0 0.0
    %241 = vmatprep.subr.mxu0 0.0
    %242 = vmatpush2.msra.mxu0 0.0
    %243 = vmatprep.subr.mxu0 0.0
    %244 = vmatpush2.msra.mxu0 0.0
    %245 = vmatprep.subr.mxu0 0.0
    %246 = vmatpush2.msra.mxu0 0.0
    %247 = vmatprep.subr.mxu0 0.0
    %248 = vmatpush2.msra.mxu0 0.0
    %249 = vmatprep.subr.mxu0 0.0
    %250 = vmatpush2.msra.mxu0 0.0
    %251 = vmatprep.subr.mxu0 0.0
    %252 = vmatpush2.msra.mxu0 0.0
    %253 = vmatprep.subr.mxu0 0.0
    %254 = vmatpush2.msra.mxu0 0.0
    %255 = vmatprep.subr.mxu0 0.0
    %256 = vmatpush2.msra.mxu0 0.0
    %257 = vmatprep.subr.mxu0 0.0
    %258 = vmatpush2.msra.mxu0 0.0
    %259 = vmatprep.subr.mxu0 0.0
    %260 = vmatpush2.msra.mxu0 0.0
    %261 = vmatprep.subr.mxu0 0.0
    %262 = vmatpush2.msra.mxu0 0.0
    %263 = vmatprep.subr.mxu0 0.0
    %264 = vmatpush2.msra.mxu0 0.0
    %265 = vmatprep.subr.mxu0 0.0
    %266 = vmatpush2.msra.mxu0 0.0
    %267 = vmatprep.subr.mxu0 0.0
    %268 = vmatpush2.msra.mxu0 0.0
    %269 = vmatprep.mubr.f32.mxu0 0.0
    %270 = vmatmul.mubr.f32.gmra.mxu0 %v175
    %v271 = vpop.f32.mrf.mxu0
    %v272 = vadd.f32 %v204, %v271
    %v273 = vpop.f32.mrf.mxu0
    %274 = vmatprep.mubr.f32.mxu0 0.0
    %275 = vmatmul.mubr.f32.gmra.mxu0 %v176
    %v276 = vpop.f32.mrf.mxu0
    %v277 = vadd.f32 %v204, %v276
    %v278 = vpop.f32.mrf.mxu0
    %279 = vmatprep.mubr.f32.mxu0 0.0
    %280 = vmatmul.mubr.f32.gmra.mxu0 %v177
    %v281 = vpop.f32.mrf.mxu0
    %v282 = vadd.f32 %v204, %v281
    %v283 = vpop.f32.mrf.mxu0
    %284 = vmatprep.mubr.f32.mxu0 0.0
    %285 = vmatmul.mubr.f32.gmra.mxu0 %v178
    %v286 = vpop.f32.mrf.mxu0
    %v287 = vadd.f32 %v204, %v286
    %v288 = vpop.f32.mrf.mxu0
    %289 = vmatprep.mubr.f32.mxu0 0.0
    %290 = vmatmul.mubr.f32.gmra.mxu0 %v179
    %v291 = vpop.f32.mrf.mxu0
    %v292 = vadd.f32 %v204, %v291
    %v293 = vpop.f32.mrf.mxu0
    %294 = vmatprep.mubr.f32.mxu0 0.0
    %295 = vmatmul.mubr.f32.gmra.mxu0 %v180
    %v296 = vpop.f32.mrf.mxu0
    %v297 = vadd.f32 %v204, %v296
    %v298 = vpop.f32.mrf.mxu0
    %299 = vmatprep.mubr.f32.mxu0 0.0
    %300 = vmatmul.mubr.f32.gmra.mxu0 %v181
    %v301 = vpop.f32.mrf.mxu0
    %v302 = vadd.f32 %v204, %v301
    %v303 = vpop.f32.mrf.mxu0
    %304 = vmatprep.mubr.f32.mxu0 0.0
    %305 = vmatmul.mubr.f32.gmra.mxu0 %v182
    %v306 = vpop.f32.mrf.mxu0
    %v307 = vadd.f32 %v204, %v306
    %v308 = vpop.f32.mrf.mxu0
    %309 = vdwg.mxu0
    %v310 = vmax.f32 %v272, 0.0
    %v311 = vmax.f32 %v277, 0.0
    %v312 = vmax.f32 %v282, 0.0
    %v313 = vmax.f32 %v287, 0.0
    %v314 = vmax.f32 %v292, 0.0
    %v315 = vmax.f32 %v297, 0.0
    %v316 = vmax.f32 %v302, 0.0
    %v317 = vmax.f32 %v307, 0.0
    %s318 = scalar_lea.vmem [#allocation2], 256
    %v319 = vld [vmem:[%s318] sm:$0xff]
    %v320 = vld [vmem:[%s318 + $0x8] sm:$0xff]
    %v321 = vld [vmem:[%s318 + $0x10] sm:$0xff]
    %v322 = vld [vmem:[%s318 + $0x18] sm:$0xff]
    %v323 = vld [vmem:[%s318 + $0x20] sm:$0xff]
    %v324 = vld [vmem:[%s318 + $0x28] sm:$0xff]
    %v325 = vld [vmem:[%s318 + $0x30] sm:$0xff]
    %v326 = vld [vmem:[%s318 + $0x38] sm:$0xff]
    %v327 = vld [vmem:[%s318 + $0x40] sm:$0xff]
    %v328 = vld [vmem:[%s318 + $0x48] sm:$0xff]
    %v329 = vld [vmem:[%s318 + $0x50] sm:$0xff]
    %v330 = vld [vmem:[%s318 + $0x58] sm:$0xff]
    %v331 = vld [vmem:[%s318 + $0x60] sm:$0xff]
    %v332 = vld [vmem:[%s318 + $0x68] sm:$0xff]
    %v333 = vld [vmem:[%s318 + $0x70] sm:$0xff]
    %v334 = vld [vmem:[%s318 + $0x78] sm:$0xff]
    %v335 = vld [vmem:[%s2 + $0x2] sm:$0x1]
    %v336 = vlaneseq
    %v337 = vshrl.u32 %v336, 7
    %v338 = vsub.s32 0, %v337
    %v339 = vrot.slane %v335, %v338
    %340 = vmatprep.subr.mxu0 0.0
    %341 = vmatpush1.msra.mxu0 %v334
    %342 = vmatprep.subr.mxu0 0.0
    %343 = vmatpush1.msra.mxu0 %v333
    %344 = vmatprep.subr.mxu0 0.0
    %345 = vmatpush1.msra.mxu0 %v332
    %346 = vmatprep.subr.mxu0 0.0
    %347 = vmatpush1.msra.mxu0 %v331
    %348 = vmatprep.subr.mxu0 0.0
    %349 = vmatpush1.msra.mxu0 %v330
    %350 = vmatprep.subr.mxu0 0.0
    %351 = vmatpush1.msra.mxu0 %v329
    %352 = vmatprep.subr.mxu0 0.0
    %353 = vmatpush1.msra.mxu0 %v328
    %354 = vmatprep.subr.mxu0 0.0
    %355 = vmatpush1.msra.mxu0 %v327
    %356 = vmatprep.subr.mxu0 0.0
    %357 = vmatpush1.msra.mxu0 %v326
    %358 = vmatprep.subr.mxu0 0.0
    %359 = vmatpush1.msra.mxu0 %v325
    %360 = vmatprep.subr.mxu0 0.0
    %361 = vmatpush1.msra.mxu0 %v324
    %362 = vmatprep.subr.mxu0 0.0
    %363 = vmatpush1.msra.mxu0 %v323
    %364 = vmatprep.subr.mxu0 0.0
    %365 = vmatpush1.msra.mxu0 %v322
    %366 = vmatprep.subr.mxu0 0.0
    %367 = vmatpush1.msra.mxu0 %v321
    %368 = vmatprep.subr.mxu0 0.0
    %369 = vmatpush1.msra.mxu0 %v320
    %370 = vmatprep.subr.mxu0 0.0
    %371 = vmatpush1.msra.mxu0 %v319
    %372 = vmatprep.subr.mxu0 0.0
    %373 = vmatpush2.msra.mxu0 0.0
    %374 = vmatprep.subr.mxu0 0.0
    %375 = vmatpush2.msra.mxu0 0.0
    %376 = vmatprep.subr.mxu0 0.0
    %377 = vmatpush2.msra.mxu0 0.0
    %378 = vmatprep.subr.mxu0 0.0
    %379 = vmatpush2.msra.mxu0 0.0
    %380 = vmatprep.subr.mxu0 0.0
    %381 = vmatpush2.msra.mxu0 0.0
    %382 = vmatprep.subr.mxu0 0.0
    %383 = vmatpush2.msra.mxu0 0.0
    %384 = vmatprep.subr.mxu0 0.0
    %385 = vmatpush2.msra.mxu0 0.0
    %386 = vmatprep.subr.mxu0 0.0
    %387 = vmatpush2.msra.mxu0 0.0
    %388 = vmatprep.subr.mxu0 0.0
    %389 = vmatpush2.msra.mxu0 0.0
    %390 = vmatprep.subr.mxu0 0.0
    %391 = vmatpush2.msra.mxu0 0.0
    %392 = vmatprep.subr.mxu0 0.0
    %393 = vmatpush2.msra.mxu0 0.0
    %394 = vmatprep.subr.mxu0 0.0
    %395 = vmatpush2.msra.mxu0 0.0
    %396 = vmatprep.subr.mxu0 0.0
    %397 = vmatpush2.msra.mxu0 0.0
    %398 = vmatprep.subr.mxu0 0.0
    %399 = vmatpush2.msra.mxu0 0.0
    %400 = vmatprep.subr.mxu0 0.0
    %401 = vmatpush2.msra.mxu0 0.0
    %402 = vmatprep.subr.mxu0 0.0
    %403 = vmatpush2.msra.mxu0 0.0
    %404 = vmatprep.mubr.f32.mxu0 0.0
    %405 = vmatmul.mubr.f32.gmra.mxu0 %v310
    %v406 = vpop.f32.mrf.mxu0
    %v407 = vadd.f32 %v339, %v406
    %v408 = vpop.f32.mrf.mxu0
    %409 = vmatprep.mubr.f32.mxu0 0.0
    %410 = vmatmul.mubr.f32.gmra.mxu0 %v311
    %v411 = vpop.f32.mrf.mxu0
    %v412 = vadd.f32 %v339, %v411
    %v413 = vpop.f32.mrf.mxu0
    %414 = vmatprep.mubr.f32.mxu0 0.0
    %415 = vmatmul.mubr.f32.gmra.mxu0 %v312
    %v416 = vpop.f32.mrf.mxu0
    %v417 = vadd.f32 %v339, %v416
    %v418 = vpop.f32.mrf.mxu0
    %419 = vmatprep.mubr.f32.mxu0 0.0
    %420 = vmatmul.mubr.f32.gmra.mxu0 %v313
    %v421 = vpop.f32.mrf.mxu0
    %v422 = vadd.f32 %v339, %v421
    %v423 = vpop.f32.mrf.mxu0
    %424 = vmatprep.mubr.f32.mxu0 0.0
    %425 = vmatmul.mubr.f32.gmra.mxu0 %v314
    %v426 = vpop.f32.mrf.mxu0
    %v427 = vadd.f32 %v339, %v426
    %v428 = vpop.f32.mrf.mxu0
    %429 = vmatprep.mubr.f32.mxu0 0.0
    %430 = vmatmul.mubr.f32.gmra.mxu0 %v315
    %v431 = vpop.f32.mrf.mxu0
    %v432 = vadd.f32 %v339, %v431
    %v433 = vpop.f32.mrf.mxu0
    %434 = vmatprep.mubr.f32.mxu0 0.0
    %435 = vmatmul.mubr.f32.gmra.mxu0 %v316
    %v436 = vpop.f32.mrf.mxu0
    %v437 = vadd.f32 %v339, %v436
    %v438 = vpop.f32.mrf.mxu0
    %439 = vmatprep.mubr.f32.mxu0 0.0
    %440 = vmatmul.mubr.f32.gmra.mxu0 %v317
    %v441 = vpop.f32.mrf.mxu0
    %v442 = vadd.f32 %v339, %v441
    %v443 = vpop.f32.mrf.mxu0
    %444 = vdwg.mxu0
    %vm445 = vcmask 130048
    %446 = vst.msk [vmem:[%s3] sm:$0xff] %vm445, %v407
    %447 = vst.msk [vmem:[%s3 + $0x8] sm:$0xff] %vm445, %v412
    %448 = vst.msk [vmem:[%s3 + $0x10] sm:$0xff] %vm445, %v417
    %449 = vst.msk [vmem:[%s3 + $0x18] sm:$0xff] %vm445, %v422
    %450 = vst.msk [vmem:[%s3 + $0x20] sm:$0xff] %vm445, %v427
    %451 = vst.msk [vmem:[%s3 + $0x28] sm:$0xff] %vm445, %v432
    %452 = vst.msk [vmem:[%s3 + $0x30] sm:$0xff] %vm445, %v437
    %453 = vst.msk [vmem:[%s3 + $0x38] sm:$0xff] %vm445, %v442
    // Predicated region
    $region18: #{mlp_forward.1} parent=1 // pred_check
      _
    $region19: #{mlp_forward.1} parent=1 // pred_check_branch
      %455 = sbr.rel (0) target = $region21
    $region20: #{mlp_forward.1} parent=1 // pred_region
      _
    $region21: #{mlp_forward.1} parent=1 // pred_fallthru
      _
    // Predicated region
    $region22: #{mlp_forward.1} parent=1 // pred_check
      _
    $region23: #{mlp_forward.1} parent=1 // pred_check_branch
      %457 = sbr.rel (0) target = $region25
    $region24: #{mlp_forward.1} parent=1 // pred_region
      _
    $region25: #{mlp_forward.1} parent=1 // pred_fallthru
      _
    %458 = vsyncpa [#allocation3], 1

</llo_original>
